<compile_context>
chip_gen: v7x
topology: tpu7x:2x2x1
jax: 0.10.0
libtpu: 0.0.40
codegen_flags: <defaults>
</compile_context>

<pallas_src>
import jax
import jax.numpy as jnp
from jax import lax
from jax.experimental import pallas as pl
from jax.experimental.pallas import tpu as pltpu

_EPS = 1e-12
_BF16_SUBLANE = 16  # bf16 packs 16 rows per sublane group


def _round_up(x, m):
    return (x + m - 1) // m * m


def _prompt_extractor_kernel(emb_ref, w_ref, out_ref):
    """One N-tile of the prompt ensemble.

    emb_ref : (T, tn, D_in)  bf16 per-template prompt embeddings (one noun tile)
    w_ref   : (D_in, D_out)  bf16 CLIP text projection (same block every step)
    out_ref : (tn, D_out)    f32 ensembled, L2-normalized text features
    """
    T, tn, d_in = emb_ref.shape
    d_out = w_ref.shape[1]

    # Templates folded into the MXU M dimension: one (T*tn, D_in) @ (D_in, D_out)
    # bf16 matmul with f32 accumulation.  tn is a multiple of 16 (bf16 sublane
    # packing), so the reshape is a relabel, not a relayout.
    emb = emb_ref[...].reshape(T * tn, d_in)
    feat = jnp.dot(emb, w_ref[...], preferred_element_type=jnp.float32)
    feat = feat.reshape(T, tn, d_out)

    # text_features /= text_features.norm(dim=-1, keepdim=True)
    # rsqrt -> EUP slot; scale -> single VPU multiply.  Epsilon guards the
    # all-zero rows introduced by N-padding.
    inv_norm = lax.rsqrt(jnp.sum(feat * feat, axis=-1, keepdims=True) + _EPS)
    feat = feat * inv_norm

    # torch.stack(bucket).mean(dim=0) then renormalize.
    # mean/||mean|| == sum/||sum|| (T > 0), so skip the divide-by-T.
    ens = jnp.sum(feat, axis=0)
    inv_norm2 = lax.rsqrt(jnp.sum(ens * ens, axis=-1, keepdims=True) + _EPS)
    out_ref[...] = (ens * inv_norm2).astype(out_ref.dtype)


def prompt_extractor_forward(prompt_emb, text_proj, *, noun_tile=64):
    """prompt_emb: (T, N, D_in) float, text_proj: (D_in, D_out) float.

    Returns (N, D_out) float32 ensembled, L2-normalized text features.
    """
    T, N, d_in = prompt_emb.shape
    d_out = text_proj.shape[1]

    # Noun tile: multiple of 16 (bf16 sublane packing).  Default 64 so that
    # with T=4 templates M = T*tn = 256 (one full v6e/v7x MXU push); shrink to
    # the padded N for tiny problems so we don't blow up the pad.
    tn = noun_tile if N >= noun_tile else _round_up(N, _BF16_SUBLANE)
    tn = _round_up(tn, _BF16_SUBLANE)
    n_pad = _round_up(N, tn)

    # bf16 operands for the MXU (halves HBM/VMEM traffic); accumulate in f32.
    emb_bf16 = prompt_emb.astype(jnp.bfloat16)
    if n_pad != N:
        emb_bf16 = jnp.pad(emb_bf16, ((0, 0), (0, n_pad - N), (0, 0)))
    w_bf16 = text_proj.astype(jnp.bfloat16)

    grid = (n_pad // tn,)
    cost = pl.CostEstimate(
        flops=2 * T * n_pad * d_in * d_out + 4 * T * n_pad * d_out,
        transcendentals=(T + 1) * n_pad,
        bytes_accessed=emb_bf16.size * 2 + w_bf16.size * 2 + n_pad * d_out * 4,
    )

    out = pl.pallas_call(
        _prompt_extractor_kernel,
        out_shape=jax.ShapeDtypeStruct((n_pad, d_out), jnp.float32),
        grid=grid,
        in_specs=[
            # Embedding tile marches along the noun axis.
            pl.BlockSpec((T, tn, d_in), lambda i: (0, i, 0)),
            # Weight block index is constant across the grid -> DMA'd once.
            pl.BlockSpec((d_in, d_out), lambda i: (0, 0)),
        ],
        out_specs=pl.BlockSpec((tn, d_out), lambda i: (i, 0)),
        compiler_params=pltpu.CompilerParams(
            dimension_semantics=("parallel",),  # shard N tiles across v7x's 2 TCs
        ),
        cost_estimate=cost,
    )(emb_bf16, w_bf16)

    return out[:N]


def _reference(prompt_emb, text_proj):
    feat = jnp.einsum("tnd,de->tne", prompt_emb, text_proj)
    feat = feat / jnp.linalg.norm(feat, axis=-1, keepdims=True)
    mean = feat.mean(axis=0)
    return mean / jnp.linalg.norm(mean, axis=-1, keepdims=True)


if __name__ == "__main__":
    key = jax.random.PRNGKey(0)
    k_emb, k_w = jax.random.split(key)

    T = 4        # number of prompt templates
    N = 8        # number of nouns (class names) -> exercises pad-to-16 + slice
    D_in = 128   # CLIP text transformer width (synthetic, small)
    D_out = 128  # CLIP joint embedding dim (synthetic, small)

    # Deterministic synthetic "encoded prompt" embeddings and projection weight.
    prompt_emb = jax.random.normal(k_emb, (T, N, D_in), dtype=jnp.float32)
    text_proj = jax.random.normal(k_w, (D_in, D_out), dtype=jnp.float32) * 0.02

    out = prompt_extractor_forward(prompt_emb, text_proj)
    out = jax.block_until_ready(out)

    ref = _reference(prompt_emb, text_proj)
    assert out.shape == (N, D_out)
    # bf16 MXU operands -> relax the f32 1e-5 tolerance.
    assert jnp.allclose(out, ref, atol=1e-2, rtol=1e-2), float(
        jnp.max(jnp.abs(out - ref)))
    # Outputs are unit-norm rows.
    assert jnp.allclose(jnp.linalg.norm(out, axis=-1), 1.0, atol=1e-3)

    print("KERNEL_OK")
</pallas_src>

<mosaic_0001>
module attributes {stable_mosaic.version = 11 : i64} {
  func.func @_prompt_extractor_kernel(%arg0: i32, %arg1: memref<4x16x128xbf16, #tpu.memory_space<vmem>>, %arg2: memref<128x128xbf16, #tpu.memory_space<vmem>>, %arg3: memref<16x128xf32, #tpu.memory_space<vmem>>) attributes {dimension_semantics = [#tpu.dimension_semantics<parallel>], iteration_bounds = array<i64: 1>, scalar_prefetch = 0 : i64, scratch_operands = 0 : i64, tpu.core_type = #tpu.core_type<tc>, window_params = [{transform_indices = @transform_0, window_bounds = array<i64: 4, 16, 128>}, {pipeline_mode = #tpu.pipeline_mode<synchronous>, transform_indices = @transform_1, window_bounds = array<i64: 128, 128>}, {transform_indices = @transform_2, window_bounds = array<i64: 16, 128>}]} {
    %c0 = arith.constant 0 : index
    %c0_0 = arith.constant 0 : index
    %c0_1 = arith.constant 0 : index
    %0 = vector.load %arg1[%c0, %c0_0, %c0_1] : memref<4x16x128xbf16, #tpu.memory_space<vmem>>, vector<4x16x128xbf16>
    %1 = vector.shape_cast %0 : vector<4x16x128xbf16> to vector<64x128xbf16>
    %c0_2 = arith.constant 0 : index
    %c0_3 = arith.constant 0 : index
    %2 = vector.load %arg2[%c0_2, %c0_3] : memref<128x128xbf16, #tpu.memory_space<vmem>>, vector<128x128xbf16>
    %cst = arith.constant dense<0.000000e+00> : vector<64x128xf32>
    %3 = tpu.matmul %1, %2, %cst {dimension_numbers = #tpu.dot_dimension_numbers<[1], [0], [0], [1], [0, 0, 1, 1], [], []>} : vector<64x128xbf16>, vector<128x128xbf16>, vector<64x128xf32> -> vector<64x128xf32>
    %4 = vector.shape_cast %3 : vector<64x128xf32> to vector<4x16x128xf32>
    %5 = arith.mulf %4, %4 : vector<4x16x128xf32>
    %cst_4 = arith.constant dense<0.000000e+00> : vector<4x16xf32>
    %6 = vector.multi_reduction <add>, %5, %cst_4 [2] : vector<4x16x128xf32> to vector<4x16xf32>
    %7 = vector.shape_cast %6 : vector<4x16xf32> to vector<4x16x1xf32>
    %cst_5 = arith.constant 9.99999996E-13 : f32
    %8 = vector.broadcast %cst_5 : f32 to vector<4x16x1xf32>
    %9 = arith.addf %7, %8 : vector<4x16x1xf32>
    %10 = math.rsqrt %9 : vector<4x16x1xf32>
    %11 = vector.broadcast %10 : vector<4x16x1xf32> to vector<4x16x128xf32>
    %12 = arith.mulf %4, %11 : vector<4x16x128xf32>
    %cst_6 = arith.constant dense<0.000000e+00> : vector<16x128xf32>
    %13 = vector.multi_reduction <add>, %12, %cst_6 [0] : vector<4x16x128xf32> to vector<16x128xf32>
    %14 = arith.mulf %13, %13 : vector<16x128xf32>
    %cst_7 = arith.constant dense<0.000000e+00> : vector<16xf32>
    %15 = vector.multi_reduction <add>, %14, %cst_7 [1] : vector<16x128xf32> to vector<16xf32>
    %16 = vector.shape_cast %15 : vector<16xf32> to vector<16x1xf32>
    %cst_8 = arith.constant 9.99999996E-13 : f32
    %17 = vector.broadcast %cst_8 : f32 to vector<16x1xf32>
    %18 = arith.addf %16, %17 : vector<16x1xf32>
    %19 = math.rsqrt %18 : vector<16x1xf32>
    %20 = vector.broadcast %19 : vector<16x1xf32> to vector<16x128xf32>
    %21 = arith.mulf %13, %20 : vector<16x128xf32>
    %c0_9 = arith.constant 0 : index
    %c0_10 = arith.constant 0 : index
    %22 = vector.load %arg3[%c0_9, %c0_10] : memref<16x128xf32, #tpu.memory_space<vmem>>, vector<16x128xf32>
    tpu.vector_store %arg3[%c0_9, %c0_10], %21 {strides = array<i32>} : memref<16x128xf32, #tpu.memory_space<vmem>>, vector<16x128xf32>,
    return
  }
  func.func @transform_0(%arg0: i32) -> (i32, i32, i32) {
    %c0_i32 = arith.constant 0 : i32
    %c0_i32_0 = arith.constant 0 : i32
    %c0_i32_1 = arith.constant 0 : i32
    return %c0_i32, %arg0, %c0_i32_0 : i32, i32, i32
  }
  func.func @transform_1(%arg0: i32) -> (i32, i32) {
    %c0_i32 = arith.constant 0 : i32
    %c0_i32_0 = arith.constant 0 : i32
    %c0_i32_1 = arith.constant 0 : i32
    return %c0_i32, %c0_i32_0 : i32, i32
  }
  func.func @transform_2(%arg0: i32) -> (i32, i32) {
    %c0_i32 = arith.constant 0 : i32
    %c0_i32_0 = arith.constant 0 : i32
    return %arg0, %c0_i32 : i32, i32
  }
}

</mosaic_0001>

<llo_original>
// kernel: tpu_custom_call.1
$region0: #{tpu_custom_call.1}
  #allocation0 [shape = 'u32[]', space=smem, size = 0x4, offset = 0x4, fixed_abs, tag = 'smem constant byte address 0x4 - core index']
  #allocation1 [shape = 'u32[144,128]{1,0:T(1,128)}', space=vmem, size = 0x12000, scoped, tag = 'internal scratch']
  %s0 = inlined_call_operand.hbm [shape: bf16[4,16,128], index: 0, kind: input, shape index: {}]
  %s1 = inlined_call_operand.hbm [shape: bf16[128,128], index: 1, kind: input, shape index: {}]
  %s2 = inlined_call_operand.hbm [shape: f32[16,128], index: 2, kind: output, shape index: {}]
  %s3 = sld [smem:[#allocation0]]
  $region26: #{tpu_custom_call.1} parent=0
    _
  %s5 = ssub.s32 1, %s3
  %s6 = scalar_select 0, %s5, %s3
  $region1: #{tpu_custom_call.1} parent=0
    #allocation2 [shape = 'u8[16384]{0}', space=vmem, size = 0x4000, scoped, tag = 'input window, operand 0, single buffered']
    #allocation3 [shape = 's32[1]{0}', space=sflag, size = 0x4, scoped, tag = 'scoped memory for tpu_custom_call.1']
    #allocation4 [shape = 's32[1]{0}', space=sflag, size = 0x4, scoped, tag = 'scoped memory for tpu_custom_call.1']
    #allocation5 [shape = 'u8[32768]{0}', space=vmem, size = 0x8000, scoped, tag = 'input window, operand 1, single buffered']
    #allocation6 [shape = 's32[1]{0}', space=sflag, size = 0x4, scoped, tag = 'scoped memory for tpu_custom_call.1']
    #allocation7 [shape = 'u8[8192]{0}', space=vmem, size = 0x2000, scoped, tag = 'output window, operand 0, single buffered']
    %7 = vsyncpa [#allocation3], 0
    %8 = vsyncpa [#allocation6], 0
    %9 = vsyncpa [#allocation4], 0
    // Predicated region
    $region2: #{tpu_custom_call.1} parent=1 // pred_check
      _
    $region3: #{tpu_custom_call.1} parent=1 // pred_check_branch
      %11 = sbr.rel (0) target = $region5
    $region4: #{tpu_custom_call.1} parent=1 // pred_region
      %s13 = ssub.s32 512, 512
      %14 = vsyncadd [#allocation3], %s13
      %s15 = sshll.u32 [#allocation2], 4
      %s16 = int_to_ptr.vmem [resolvable:$true] %s15
      %21 = dma.hbm_to_vmem [thread:$0]  %s0, 512, %s16, [#allocation3], 64, 64, 4
    $region5: #{tpu_custom_call.1} parent=1 // pred_fallthru
      _
    // Predicated region
    $region6: #{tpu_custom_call.1} parent=1 // pred_check
      _
    $region7: #{tpu_custom_call.1} parent=1 // pred_check_branch
      %23 = sbr.rel (0) target = $region9
    $region8: #{tpu_custom_call.1} parent=1 // pred_region
      %s25 = ssub.s32 1024, 1024
      %26 = vsyncadd [#allocation6], %s25
      %s27 = sshll.u32 [#allocation5], 4
      %s28 = int_to_ptr.vmem [resolvable:$true] %s27
      %33 = dma.hbm_to_vmem [thread:$0]  %s1, 1024, %s28, [#allocation6], 64, 64, 4
    $region9: #{tpu_custom_call.1} parent=1 // pred_fallthru
      _
    // Predicated region
    $region10: #{tpu_custom_call.1} parent=1 // pred_check
      _
    $region11: #{tpu_custom_call.1} parent=1 // pred_check_branch
      %35 = sbr.rel (0) target = $region13
    $region12: #{tpu_custom_call.1} parent=1 // pred_region
      %36 = dma.done [#allocation3], 512
    $region13: #{tpu_custom_call.1} parent=1 // pred_fallthru
      _
    // Predicated region
    $region14: #{tpu_custom_call.1} parent=1 // pred_check
      _
    $region15: #{tpu_custom_call.1} parent=1 // pred_check_branch
      %38 = sbr.rel (0) target = $region17
    $region16: #{tpu_custom_call.1} parent=1 // pred_region
      %39 = dma.done [#allocation6], 1024
    $region17: #{tpu_custom_call.1} parent=1 // pred_fallthru
      _
    %v41 = vld [vmem:[#allocation2] sm:$0xf]
    %v42 = vld [vmem:[#allocation2 + $0x4] sm:$0xf]
    %v43 = vld [vmem:[#allocation2 + $0x8] sm:$0xf]
    %v44 = vld [vmem:[#allocation2 + $0xc] sm:$0xf]
    %v45 = vld [vmem:[#allocation2 + $0x10] sm:$0xf]
    %v46 = vld [vmem:[#allocation2 + $0x14] sm:$0xf]
    %v47 = vld [vmem:[#allocation2 + $0x18] sm:$0xf]
    %v48 = vld [vmem:[#allocation2 + $0x1c] sm:$0xf]
    %v49 = vld [vmem:[#allocation5] sm:$0xf]
    %v50 = vld [vmem:[#allocation5 + $0x4] sm:$0xf]
    %v51 = vld [vmem:[#allocation5 + $0x8] sm:$0xf]
    %v52 = vld [vmem:[#allocation5 + $0xc] sm:$0xf]
    %v53 = vld [vmem:[#allocation5 + $0x10] sm:$0xf]
    %v54 = vld [vmem:[#allocation5 + $0x14] sm:$0xf]
    %v55 = vld [vmem:[#allocation5 + $0x18] sm:$0xf]
    %v56 = vld [vmem:[#allocation5 + $0x1c] sm:$0xf]
    %v57 = vld [vmem:[#allocation5 + $0x20] sm:$0xf]
    %v58 = vld [vmem:[#allocation5 + $0x24] sm:$0xf]
    %v59 = vld [vmem:[#allocation5 + $0x28] sm:$0xf]
    %v60 = vld [vmem:[#allocation5 + $0x2c] sm:$0xf]
    %v61 = vld [vmem:[#allocation5 + $0x30] sm:$0xf]
    %v62 = vld [vmem:[#allocation5 + $0x34] sm:$0xf]
    %v63 = vld [vmem:[#allocation5 + $0x38] sm:$0xf]
    %v64 = vld [vmem:[#allocation5 + $0x3c] sm:$0xf]
    %v73 = vunpack.c.l.b16 %v41
    %v74 = vunpack.c.l.b16 %v42
    %v75 = vunpack.c.l.b16 %v43
    %v76 = vunpack.c.l.b16 %v44
    %v77 = vunpack.c.l.b16 %v45
    %v78 = vunpack.c.l.b16 %v46
    %v79 = vunpack.c.l.b16 %v47
    %v80 = vunpack.c.l.b16 %v48
    %v81 = vpack.c.b16 %v74, %v73
    %v82 = vpack.c.b16 %v76, %v75
    %v83 = vpack.c.b16 %v78, %v77
    %v84 = vpack.c.b16 %v80, %v79
    %v105 = vunpack.c.l.b16 %v49
    %v106 = vunpack.c.l.b16 %v50
    %v107 = vunpack.c.l.b16 %v51
    %v108 = vunpack.c.l.b16 %v52
    %v109 = vunpack.c.l.b16 %v53
    %v110 = vunpack.c.l.b16 %v54
    %v111 = vunpack.c.l.b16 %v55
    %v112 = vunpack.c.l.b16 %v56
    %v113 = vunpack.c.l.b16 %v57
    %v114 = vunpack.c.l.b16 %v58
    %v115 = vunpack.c.l.b16 %v59
    %v116 = vunpack.c.l.b16 %v60
    %v117 = vunpack.c.l.b16 %v61
    %v118 = vunpack.c.l.b16 %v62
    %v119 = vunpack.c.l.b16 %v63
    %v120 = vunpack.c.l.b16 %v64
    %v121 = vpack.c.b16 %v106, %v105
    %v122 = vpack.c.b16 %v108, %v107
    %v123 = vpack.c.b16 %v110, %v109
    %v124 = vpack.c.b16 %v112, %v111
    %v125 = vpack.c.b16 %v114, %v113
    %v126 = vpack.c.b16 %v116, %v115
    %v127 = vpack.c.b16 %v118, %v117
    %v128 = vpack.c.b16 %v120, %v119
    %137 = vmatprep.subr.bf16.mxu0 0
    %138 = vmatpush1.bf16.msra.mxu0 %v121
    %139 = vmatprep.subr.bf16.mxu0 0
    %140 = vmatpush1.bf16.msra.mxu0 %v122
    %141 = vmatprep.subr.bf16.mxu0 0
    %142 = vmatpush1.bf16.msra.mxu0 %v123
    %143 = vmatprep.subr.bf16.mxu0 0
    %144 = vmatpush1.bf16.msra.mxu0 %v124
    %145 = vmatprep.subr.bf16.mxu0 0
    %146 = vmatpush1.bf16.msra.mxu0 %v125
    %147 = vmatprep.subr.bf16.mxu0 0
    %148 = vmatpush1.bf16.msra.mxu0 %v126
    %149 = vmatprep.subr.bf16.mxu0 0
    %150 = vmatpush1.bf16.msra.mxu0 %v127
    %151 = vmatprep.subr.bf16.mxu0 0
    %152 = vmatpush1.bf16.msra.mxu0 %v128
    %153 = vmatprep.subr.bf16.mxu0 0
    %154 = vmatpush1.bf16.msra.mxu0 0
    %155 = vmatprep.subr.bf16.mxu0 0
    %156 = vmatpush1.bf16.msra.mxu0 0
    %157 = vmatprep.subr.bf16.mxu0 0
    %158 = vmatpush1.bf16.msra.mxu0 0
    %159 = vmatprep.subr.bf16.mxu0 0
    %160 = vmatpush1.bf16.msra.mxu0 0
    %161 = vmatprep.subr.bf16.mxu0 0
    %162 = vmatpush1.bf16.msra.mxu0 0
    %163 = vmatprep.subr.bf16.mxu0 0
    %164 = vmatpush1.bf16.msra.mxu0 0
    %165 = vmatprep.subr.bf16.mxu0 0
    %166 = vmatpush1.bf16.msra.mxu0 0
    %167 = vmatprep.subr.bf16.mxu0 0
    %168 = vmatpush1.bf16.msra.mxu0 0
    %169 = vmatprep.mubr.bf16.mxu0 0
    %170 = vmatmul.mubr.bf16.gmra.mrb[0].mxu0 %v81
    %v171 = vpop.f32.mrb[0].mxu0
    %v172 = vadd.f32 0.0, %v171
    %v173 = vpop.f32.mrb[0].mxu0
    %v174 = vpop.f32.mrb[0].mxu0
    %v175 = vadd.f32 0.0, %v174
    %v176 = vpop.f32.mrb[0].mxu0
    %177 = vmatprep.mubr.bf16.mxu0 0
    %178 = vmatmul.mubr.bf16.gmra.mrb[0].mxu0 %v82
    %v179 = vpop.f32.mrb[0].mxu0
    %v180 = vadd.f32 0.0, %v179
    %v181 = vpop.f32.mrb[0].mxu0
    %v182 = vpop.f32.mrb[0].mxu0
    %v183 = vadd.f32 0.0, %v182
    %v184 = vpop.f32.mrb[0].mxu0
    %185 = vmatprep.mubr.bf16.mxu0 0
    %186 = vmatmul.mubr.bf16.gmra.mrb[0].mxu0 %v83
    %v187 = vpop.f32.mrb[0].mxu0
    %v188 = vadd.f32 0.0, %v187
    %v189 = vpop.f32.mrb[0].mxu0
    %v190 = vpop.f32.mrb[0].mxu0
    %v191 = vadd.f32 0.0, %v190
    %v192 = vpop.f32.mrb[0].mxu0
    %193 = vmatprep.mubr.bf16.mxu0 0
    %194 = vmatmul.mubr.bf16.gmra.mrb[0].mxu0 %v84
    %v195 = vpop.f32.mrb[0].mxu0
    %v196 = vadd.f32 0.0, %v195
    %v197 = vpop.f32.mrb[0].mxu0
    %v198 = vpop.f32.mrb[0].mxu0
    %v199 = vadd.f32 0.0, %v198
    %v200 = vpop.f32.mrb[0].mxu0
    %201 = vdwg.mxu0
    %v202 = vmul.f32 %v172, %v172
    %v203 = vmul.f32 %v175, %v175
    %v204 = vmul.f32 %v180, %v180
    %v205 = vmul.f32 %v183, %v183
    %v206 = vmul.f32 %v188, %v188
    %v207 = vmul.f32 %v191, %v191
    %v208 = vmul.f32 %v196, %v196
    %v209 = vmul.f32 %v199, %v199
    %210 = vadd.xlane.f32.xlu0 %v202
    %v211 = vpop.xlane.xlu0 %210
    %212 = vadd.xlane.f32.xlu0 %v203
    %v213 = vpop.xlane.xlu0 %212
    %214 = vadd.xlane.f32.xlu0 %v204
    %v215 = vpop.xlane.xlu0 %214
    %216 = vadd.xlane.f32.xlu0 %v205
    %v217 = vpop.xlane.xlu0 %216
    %218 = vadd.xlane.f32.xlu0 %v206
    %v219 = vpop.xlane.xlu0 %218
    %220 = vadd.xlane.f32.xlu0 %v207
    %v221 = vpop.xlane.xlu0 %220
    %222 = vadd.xlane.f32.xlu0 %v208
    %v223 = vpop.xlane.xlu0 %222
    %224 = vadd.xlane.f32.xlu0 %v209
    %v225 = vpop.xlane.xlu0 %224
    %v226 = vadd.f32 %v211, 1e-12
    %v227 = vadd.f32 %v213, 1e-12
    %v228 = vadd.f32 %v215, 1e-12
    %v229 = vadd.f32 %v217, 1e-12
    %v230 = vadd.f32 %v219, 1e-12
    %v231 = vadd.f32 %v221, 1e-12
    %v232 = vadd.f32 %v223, 1e-12
    %v233 = vadd.f32 %v225, 1e-12
    %v234 = vrsqrt.pop %v226
    %v235 = vrsqrt.pop %v227
    %v236 = vrsqrt.pop %v228
    %v237 = vrsqrt.pop %v229
    %v238 = vrsqrt.pop %v230
    %v239 = vrsqrt.pop %v231
    %v240 = vrsqrt.pop %v232
    %v241 = vrsqrt.pop %v233
    %v242 = vmul.f32 %v172, %v234
    %v243 = vmul.f32 %v175, %v235
    %v244 = vmul.f32 %v180, %v236
    %v245 = vmul.f32 %v183, %v237
    %v246 = vmul.f32 %v188, %v238
    %v247 = vmul.f32 %v191, %v239
    %v248 = vmul.f32 %v196, %v240
    %v249 = vmul.f32 %v199, %v241
    %v250 = vadd.f32 %v242, %v244
    %v251 = vadd.f32 %v250, %v246
    %v252 = vadd.f32 %v251, %v248
    %v253 = vadd.f32 %v243, %v245
    %v254 = vadd.f32 %v253, %v247
    %v255 = vadd.f32 %v254, %v249
    %v256 = vmul.f32 %v252, %v252
    %v257 = vmul.f32 %v255, %v255
    %258 = vadd.xlane.f32.xlu0 %v256
    %v259 = vpop.xlane.xlu0 %258
    %260 = vadd.xlane.f32.xlu0 %v257
    %v261 = vpop.xlane.xlu0 %260
    %v262 = vadd.f32 %v259, 1e-12
    %v263 = vadd.f32 %v261, 1e-12
    %v264 = vrsqrt.pop %v262
    %v265 = vrsqrt.pop %v263
    %v266 = vmul.f32 %v252, %v264
    %v267 = vmul.f32 %v255, %v265
    %268 = vst [vmem:[#allocation7] sm:$0xff] %v266
    %269 = vst [vmem:[#allocation7 + $0x8] sm:$0xff] %v267
    // Predicated region
    $region18: #{tpu_custom_call.1} parent=1 // pred_check
      _
    $region19: #{tpu_custom_call.1} parent=1 // pred_check_branch
      %271 = sbr.rel (0) target = $region21
    $region20: #{tpu_custom_call.1} parent=1 // pred_region
      %s273 = ssub.s32 256, 256
      %274 = vsyncadd [#allocation4], %s273
      %s275 = sshll.u32 [#allocation7], 4
      %s276 = int_to_ptr.vmem [resolvable:$true] %s275
      %281 = dma.vmem_to_hbm [thread:$0]  %s276, 256, %s2, [#allocation4], 128, 128, 8
    $region21: #{tpu_custom_call.1} parent=1 // pred_fallthru
      _
    // Predicated region
    $region22: #{tpu_custom_call.1} parent=1 // pred_check
      _
    $region23: #{tpu_custom_call.1} parent=1 // pred_check_branch
      %283 = sbr.rel (0) target = $region25
    $region24: #{tpu_custom_call.1} parent=1 // pred_region
      %284 = dma.done [#allocation4], 256
    $region25: #{tpu_custom_call.1} parent=1 // pred_fallthru
      _
    %285 = vsyncpa [#allocation3], 1
    %286 = vsyncpa [#allocation6], 1
    %287 = vsyncpa [#allocation4], 1

</llo_original>
